<compile_context>
chip_gen: v7x
topology: tpu7x:2x2x1
jax: 0.10.0
libtpu: 0.0.40
codegen_flags: <defaults>
</compile_context>

<pallas_src>
import math

import jax
import jax.numpy as jnp
from jax.experimental import pallas as pl
from jax.experimental.pallas import tpu as pltpu


def _round_up(x: int, m: int) -> int:
    return ((x + m - 1) // m) * m


def _gelu_tanh(x):
    # GELU with tanh approximation (matches torch approximate='tanh'); f32 math.
    c = math.sqrt(2.0 / math.pi)
    return 0.5 * x * (1.0 + jnp.tanh(c * (x + 0.044715 * x * x * x)))


def _ffn_kernel(x_ref, wh_ref, wg_ref, bh_ref, bg_ref, w2_ref, b2_ref,
                o_ref, acc_ref):
    # x_ref : (TM, Dp)          token tile (resident across the inner axis)
    # wh/wg : (Dp, TN)          GEGLU value/gate weight tiles
    # bh/bg : (1, TN)           GEGLU bias tiles
    # w2    : (TN, Op)          output-projection weight tile (K-tiled over inner)
    # b2    : (1, Op)           output bias (resident)
    # o_ref : (TM, Op)          output tile (same block across the inner axis)
    # acc   : (TM, Op) f32      VMEM accumulator scratch
    n = pl.program_id(1)

    @pl.when(n == 0)
    def _():
        acc_ref[...] = jnp.zeros_like(acc_ref)

    x = x_ref[...]
    # GEGLU halves: MXU matmuls with f32 accumulation, bias added once per N tile,
    # GELU evaluated in f32 (tanh -> EUP).
    h = jnp.dot(x, wh_ref[...], preferred_element_type=jnp.float32) + bh_ref[...]
    g = jnp.dot(x, wg_ref[...], preferred_element_type=jnp.float32) + bg_ref[...]
    act = (h * _gelu_tanh(g)).astype(w2_ref.dtype)  # narrow before the 2nd matmul

    # Dropout(p=0.0) is the identity -> skipped.
    # TODO(synk): dropout with p > 0 would need pltpu.prng_seed/prng_random_bits.

    acc_ref[...] += jnp.dot(act, w2_ref[...], preferred_element_type=jnp.float32)

    @pl.when(n == pl.num_programs(1) - 1)
    def _():
        o_ref[...] = (acc_ref[...] + b2_ref[...]).astype(o_ref.dtype)


def feedforward_pallas(x, w1, b1, w2, b2, *, tile_m: int = 256, tile_n: int = 256):
    """GEGLU FeedForward.

    x:  (batch, seq, dim)
    w1: (dim, 2*inner_dim)   b1: (2*inner_dim,) or (1, 2*inner_dim)
    w2: (inner_dim, dim_out) b2: (dim_out,) or (1, dim_out)
    Weights are stored as (in_features, out_features); pre-transpose torch weights.
    Returns (batch, seq, dim_out).
    """
    B, S, D = x.shape
    inner, dim_out = w2.shape
    T = B * S

    b1 = b1.reshape(1, 2 * inner)
    b2 = b2.reshape(1, dim_out)

    # Split the GEGLU projection into value / gate halves (kills the wide intermediate).
    wh, wg = w1[:, :inner], w1[:, inner:]
    bh, bg = b1[:, :inner], b1[:, inner:]

    # Tile sizes and zero-padded dims (lane-dense / MXU-friendly).
    TM = min(tile_m, _round_up(T, 8))
    TN = min(tile_n, _round_up(inner, 128))
    Tp = _round_up(T, TM)
    Np = _round_up(inner, TN)
    Dp = _round_up(D, 128)
    Op = _round_up(dim_out, 128)

    x2d = jnp.pad(x.reshape(T, D), ((0, Tp - T), (0, Dp - D)))
    wh_p = jnp.pad(wh, ((0, Dp - D), (0, Np - inner)))
    wg_p = jnp.pad(wg, ((0, Dp - D), (0, Np - inner)))
    bh_p = jnp.pad(bh, ((0, 0), (0, Np - inner)))
    bg_p = jnp.pad(bg, ((0, 0), (0, Np - inner)))
    w2_p = jnp.pad(w2, ((0, Np - inner), (0, Op - dim_out)))
    b2_p = jnp.pad(b2, ((0, 0), (0, Op - dim_out)))

    grid = (Tp // TM, Np // TN)

    # VMEM budget: double-buffered tiles + f32 accumulator (capped for v7x's 64 MiB/TC).
    itemsize = jnp.dtype(x.dtype).itemsize
    tile_bytes = (TM * Dp + 2 * Dp * TN + 2 * TN + TN * Op + Op + TM * Op) * itemsize
    acc_bytes = TM * Op * 4
    vmem_limit = int(min(max(2 * tile_bytes + acc_bytes + (8 << 20), 32 << 20), 48 << 20))

    cost = pl.CostEstimate(
        flops=2 * T * D * (2 * inner) + 2 * T * inner * dim_out,
        transcendentals=T * inner,
        bytes_accessed=itemsize * (T * D + D * 2 * inner + 2 * inner
                                   + inner * dim_out + dim_out + T * dim_out),
    )

    out_p = pl.pallas_call(
        _ffn_kernel,
        out_shape=jax.ShapeDtypeStruct((Tp, Op), x.dtype),
        grid_spec=pltpu.PrefetchScalarGridSpec(
            num_scalar_prefetch=0,
            grid=grid,
            in_specs=[
                pl.BlockSpec((TM, Dp), lambda m, n: (m, 0)),   # x tile (resident over n)
                pl.BlockSpec((Dp, TN), lambda m, n: (0, n)),   # Wh tile
                pl.BlockSpec((Dp, TN), lambda m, n: (0, n)),   # Wg tile
                pl.BlockSpec((1, TN), lambda m, n: (0, n)),    # bh tile
                pl.BlockSpec((1, TN), lambda m, n: (0, n)),    # bg tile
                pl.BlockSpec((TN, Op), lambda m, n: (n, 0)),   # W2 tile (K over inner)
                pl.BlockSpec((1, Op), lambda m, n: (0, 0)),    # b2 (resident)
            ],
            out_specs=pl.BlockSpec((TM, Op), lambda m, n: (m, 0)),
            scratch_shapes=[pltpu.VMEM((TM, Op), jnp.float32)],
        ),
        compiler_params=pltpu.CompilerParams(
            dimension_semantics=("parallel", "arbitrary"),
            vmem_limit_bytes=vmem_limit,
        ),
        cost_estimate=cost,
    )(x2d, wh_p, wg_p, bh_p, bg_p, w2_p, b2_p)

    return out_p[:T, :dim_out].reshape(B, S, dim_out)


def feedforward_reference(x, w1, b1, w2, b2):
    proj = x @ w1 + b1.reshape(1, -1)
    inner = w2.shape[0]
    h, g = proj[..., :inner], proj[..., inner:]
    act = h * _gelu_tanh(g)
    return act @ w2 + b2.reshape(1, -1)


if __name__ == "__main__":
    # Small shapes consistent with the module: dim=32, mult=4 -> inner_dim=128
    batch, seq, dim = 2, 8, 32
    mult = 4
    inner_dim = dim * mult          # 128
    dim_out = dim                   # default dim_out = dim

    key = jax.random.PRNGKey(0)
    k_x, k_w1, k_b1, k_w2, k_b2 = jax.random.split(key, 5)

    x = jax.random.normal(k_x, (batch, seq, dim), dtype=jnp.float32)

    # GEGLU proj: Linear(dim, 2*inner_dim, bias=True); stored as (in, out)
    w1 = jax.random.normal(k_w1, (dim, 2 * inner_dim), dtype=jnp.float32) * 0.02
    b1 = jax.random.normal(k_b1, (2 * inner_dim,), dtype=jnp.float32) * 0.02
    # Output Linear(inner_dim, dim_out, bias=True); stored as (in, out)
    w2 = jax.random.normal(k_w2, (inner_dim, dim_out), dtype=jnp.float32) * 0.02
    b2 = jax.random.normal(k_b2, (dim_out,), dtype=jnp.float32) * 0.02

    out = feedforward_pallas(x, w1, b1, w2, b2)
    out = jax.block_until_ready(out)

    ref = feedforward_reference(x.reshape(-1, dim), w1, b1, w2, b2).reshape(
        batch, seq, dim_out
    )
    assert out.shape == (batch, seq, dim_out)
    assert jnp.allclose(out, ref, atol=2e-5, rtol=2e-5), "mismatch vs reference"

    print("KERNEL_OK")
</pallas_src>

<mosaic_0001>
module attributes {stable_mosaic.version = 11 : i64} {
  func.func @_ffn_kernel(%arg0: i32, %arg1: i32, %arg2: memref<16x128xf32, #tpu.memory_space<vmem>>, %arg3: memref<128x128xf32, #tpu.memory_space<vmem>>, %arg4: memref<128x128xf32, #tpu.memory_space<vmem>>, %arg5: memref<1x128xf32, #tpu.memory_space<vmem>>, %arg6: memref<1x128xf32, #tpu.memory_space<vmem>>, %arg7: memref<128x128xf32, #tpu.memory_space<vmem>>, %arg8: memref<1x128xf32, #tpu.memory_space<vmem>>, %arg9: memref<16x128xf32, #tpu.memory_space<vmem>>, %arg10: memref<16x128xf32, #tpu.memory_space<vmem>>) attributes {dimension_semantics = [#tpu.dimension_semantics<parallel>, #tpu.dimension_semantics<arbitrary>], iteration_bounds = array<i64: 1, 1>, scalar_prefetch = 0 : i64, scratch_operands = 1 : i64, tpu.core_type = #tpu.core_type<tc>, window_params = [{transform_indices = @transform_0, window_bounds = array<i64: 16, 128>}, {transform_indices = @transform_1, window_bounds = array<i64: 128, 128>}, {transform_indices = @transform_2, window_bounds = array<i64: 128, 128>}, {transform_indices = @transform_3, window_bounds = array<i64: 1, 128>}, {transform_indices = @transform_4, window_bounds = array<i64: 1, 128>}, {transform_indices = @transform_5, window_bounds = array<i64: 128, 128>}, {pipeline_mode = #tpu.pipeline_mode<synchronous>, transform_indices = @transform_6, window_bounds = array<i64: 1, 128>}, {transform_indices = @transform_7, window_bounds = array<i64: 16, 128>}]} {
    %c0_i32 = arith.constant 0 : i32
    %0 = arith.cmpi eq, %arg1, %c0_i32 : i32
    %1 = arith.extui %0 : i1 to i32
    %c0_i32_0 = arith.constant 0 : i32
    %2 = arith.cmpi ne, %1, %c0_i32_0 : i32
    scf.if %2 {
      %cst_24 = arith.constant 0.000000e+00 : f32
      %36 = vector.broadcast %cst_24 : f32 to vector<16x128xf32>
      %c0_25 = arith.constant 0 : index
      %c0_26 = arith.constant 0 : index
      %37 = vector.load %arg10[%c0_25, %c0_26] : memref<16x128xf32, #tpu.memory_space<vmem>>, vector<16x128xf32>
      tpu.vector_store %arg10[%c0_25, %c0_26], %36 {strides = array<i32>} : memref<16x128xf32, #tpu.memory_space<vmem>>, vector<16x128xf32>,
    } else {
    }
    %c0 = arith.constant 0 : index
    %c0_1 = arith.constant 0 : index
    %3 = vector.load %arg2[%c0, %c0_1] : memref<16x128xf32, #tpu.memory_space<vmem>>, vector<16x128xf32>
    %c0_2 = arith.constant 0 : index
    %c0_3 = arith.constant 0 : index
    %4 = vector.load %arg3[%c0_2, %c0_3] : memref<128x128xf32, #tpu.memory_space<vmem>>, vector<128x128xf32>
    %cst = arith.constant dense<0.000000e+00> : vector<16x128xf32>
    %5 = tpu.matmul %3, %4, %cst {dimension_numbers = #tpu.dot_dimension_numbers<[1], [0], [0], [1], [0, 0, 1, 1], [], []>} : vector<16x128xf32>, vector<128x128xf32>, vector<16x128xf32> -> vector<16x128xf32>
    %c0_4 = arith.constant 0 : index
    %c0_5 = arith.constant 0 : index
    %6 = vector.load %arg5[%c0_4, %c0_5] : memref<1x128xf32, #tpu.memory_space<vmem>>, vector<1x128xf32>
    %7 = vector.broadcast %6 : vector<1x128xf32> to vector<16x128xf32>
    %8 = arith.addf %5, %7 : vector<16x128xf32>
    %c0_6 = arith.constant 0 : index
    %c0_7 = arith.constant 0 : index
    %9 = vector.load %arg4[%c0_6, %c0_7] : memref<128x128xf32, #tpu.memory_space<vmem>>, vector<128x128xf32>
    %cst_8 = arith.constant dense<0.000000e+00> : vector<16x128xf32>
    %10 = tpu.matmul %3, %9, %cst_8 {dimension_numbers = #tpu.dot_dimension_numbers<[1], [0], [0], [1], [0, 0, 1, 1], [], []>} : vector<16x128xf32>, vector<128x128xf32>, vector<16x128xf32> -> vector<16x128xf32>
    %c0_9 = arith.constant 0 : index
    %c0_10 = arith.constant 0 : index
    %11 = vector.load %arg6[%c0_9, %c0_10] : memref<1x128xf32, #tpu.memory_space<vmem>>, vector<1x128xf32>
    %12 = vector.broadcast %11 : vector<1x128xf32> to vector<16x128xf32>
    %13 = arith.addf %10, %12 : vector<16x128xf32>
    %cst_11 = arith.constant 5.000000e-01 : f32
    %14 = vector.broadcast %cst_11 : f32 to vector<16x128xf32>
    %15 = arith.mulf %14, %13 : vector<16x128xf32>
    %cst_12 = arith.constant 4.471500e-02 : f32
    %16 = vector.broadcast %cst_12 : f32 to vector<16x128xf32>
    %17 = arith.mulf %16, %13 : vector<16x128xf32>
    %18 = arith.mulf %17, %13 : vector<16x128xf32>
    %19 = arith.mulf %18, %13 : vector<16x128xf32>
    %20 = arith.addf %13, %19 : vector<16x128xf32>
    %cst_13 = arith.constant 0.797884583 : f32
    %21 = vector.broadcast %cst_13 : f32 to vector<16x128xf32>
    %22 = arith.mulf %21, %20 : vector<16x128xf32>
    %23 = math.tanh %22 : vector<16x128xf32>
    %cst_14 = arith.constant 1.000000e+00 : f32
    %24 = vector.broadcast %cst_14 : f32 to vector<16x128xf32>
    %25 = arith.addf %24, %23 : vector<16x128xf32>
    %26 = arith.mulf %15, %25 : vector<16x128xf32>
    %27 = arith.mulf %8, %26 : vector<16x128xf32>
    %c0_15 = arith.constant 0 : index
    %c0_16 = arith.constant 0 : index
    %28 = vector.load %arg10[%c0_15, %c0_16] : memref<16x128xf32, #tpu.memory_space<vmem>>, vector<16x128xf32>
    %c0_17 = arith.constant 0 : index
    %c0_18 = arith.constant 0 : index
    %29 = vector.load %arg7[%c0_17, %c0_18] : memref<128x128xf32, #tpu.memory_space<vmem>>, vector<128x128xf32>
    %cst_19 = arith.constant dense<0.000000e+00> : vector<16x128xf32>
    %30 = tpu.matmul %27, %29, %cst_19 {dimension_numbers = #tpu.dot_dimension_numbers<[1], [0], [0], [1], [0, 0, 1, 1], [], []>} : vector<16x128xf32>, vector<128x128xf32>, vector<16x128xf32> -> vector<16x128xf32>
    %31 = arith.addf %28, %30 : vector<16x128xf32>
    %c0_20 = arith.constant 0 : index
    %c0_21 = arith.constant 0 : index
    %32 = vector.load %arg10[%c0_20, %c0_21] : memref<16x128xf32, #tpu.memory_space<vmem>>, vector<16x128xf32>
    tpu.vector_store %arg10[%c0_20, %c0_21], %31 {strides = array<i32>} : memref<16x128xf32, #tpu.memory_space<vmem>>, vector<16x128xf32>,
    %c0_i32_22 = arith.constant 0 : i32
    %33 = arith.cmpi eq, %arg1, %c0_i32_22 : i32
    %34 = arith.extui %33 : i1 to i32
    %c0_i32_23 = arith.constant 0 : i32
    %35 = arith.cmpi ne, %34, %c0_i32_23 : i32
    scf.if %35 {
      %c0_24 = arith.constant 0 : index
      %c0_25 = arith.constant 0 : index
      %36 = vector.load %arg10[%c0_24, %c0_25] : memref<16x128xf32, #tpu.memory_space<vmem>>, vector<16x128xf32>
      %c0_26 = arith.constant 0 : index
      %c0_27 = arith.constant 0 : index
      %37 = vector.load %arg8[%c0_26, %c0_27] : memref<1x128xf32, #tpu.memory_space<vmem>>, vector<1x128xf32>
      %38 = vector.broadcast %37 : vector<1x128xf32> to vector<16x128xf32>
      %39 = arith.addf %36, %38 : vector<16x128xf32>
      %c0_28 = arith.constant 0 : index
      %c0_29 = arith.constant 0 : index
      %40 = vector.load %arg9[%c0_28, %c0_29] : memref<16x128xf32, #tpu.memory_space<vmem>>, vector<16x128xf32>
      tpu.vector_store %arg9[%c0_28, %c0_29], %39 {strides = array<i32>} : memref<16x128xf32, #tpu.memory_space<vmem>>, vector<16x128xf32>,
    } else {
    }
    return
  }
  func.func @transform_0(%arg0: i32, %arg1: i32) -> (i32, i32) {
    %c0_i32 = arith.constant 0 : i32
    %c0_i32_0 = arith.constant 0 : i32
    return %arg0, %c0_i32 : i32, i32
  }
  func.func @transform_1(%arg0: i32, %arg1: i32) -> (i32, i32) {
    %c0_i32 = arith.constant 0 : i32
    %c0_i32_0 = arith.constant 0 : i32
    return %c0_i32, %arg1 : i32, i32
  }
  func.func @transform_2(%arg0: i32, %arg1: i32) -> (i32, i32) {
    %c0_i32 = arith.constant 0 : i32
    %c0_i32_0 = arith.constant 0 : i32
    return %c0_i32, %arg1 : i32, i32
  }
  func.func @transform_3(%arg0: i32, %arg1: i32) -> (i32, i32) {
    %c0_i32 = arith.constant 0 : i32
    %c0_i32_0 = arith.constant 0 : i32
    return %c0_i32, %arg1 : i32, i32
  }
  func.func @transform_4(%arg0: i32, %arg1: i32) -> (i32, i32) {
    %c0_i32 = arith.constant 0 : i32
    %c0_i32_0 = arith.constant 0 : i32
    return %c0_i32, %arg1 : i32, i32
  }
  func.func @transform_5(%arg0: i32, %arg1: i32) -> (i32, i32) {
    %c0_i32 = arith.constant 0 : i32
    %c0_i32_0 = arith.constant 0 : i32
    return %arg1, %c0_i32 : i32, i32
  }
  func.func @transform_6(%arg0: i32, %arg1: i32) -> (i32, i32) {
    %c0_i32 = arith.constant 0 : i32
    %c0_i32_0 = arith.constant 0 : i32
    %c0_i32_1 = arith.constant 0 : i32
    return %c0_i32, %c0_i32_0 : i32, i32
  }
  func.func @transform_7(%arg0: i32, %arg1: i32) -> (i32, i32) {
    %c0_i32 = arith.constant 0 : i32
    %c0_i32_0 = arith.constant 0 : i32
    return %arg0, %c0_i32 : i32, i32
  }
}

</mosaic_0001>

<llo_original>
// kernel: tpu_custom_call.1
$region0: #{tpu_custom_call.1}
  #allocation0 [shape = 'u32[]', space=smem, size = 0x4, offset = 0x4, fixed_abs, tag = 'smem constant byte address 0x4 - core index']
  #allocation1 [shape = 'u32[144,128]{1,0:T(1,128)}', space=vmem, size = 0x12000, scoped, tag = 'internal scratch']
  #allocation2 [shape = 'f32[16,128]{1,0:T(8,128)}', space=vmem, size = 0x2000, scoped, tag = 'scratch operand']
  %s0 = inlined_call_operand.hbm [shape: f32[16,128], index: 0, kind: input, shape index: {}]
  %s1 = inlined_call_operand.hbm [shape: f32[128,128], index: 1, kind: input, shape index: {}]
  %s2 = inlined_call_operand.hbm [shape: f32[128,128], index: 2, kind: input, shape index: {}]
  %s3 = inlined_call_operand.vmem [shape: f32[1,128], index: 3, kind: input, shape index: {}]
  %s4 = inlined_call_operand.vmem [shape: f32[1,128], index: 4, kind: input, shape index: {}]
  %s5 = inlined_call_operand.hbm [shape: f32[128,128], index: 5, kind: input, shape index: {}]
  %s6 = inlined_call_operand.vmem [shape: f32[1,128], index: 6, kind: input, shape index: {}]
  %s7 = inlined_call_operand.hbm [shape: f32[16,128], index: 7, kind: output, shape index: {}]
  %s8 = sld [smem:[#allocation0]]
  $region62: #{tpu_custom_call.1} parent=0
    _
  %s10 = ssub.s32 1, %s8
  %s11 = scalar_select 0, %s10, %s8
  $region1: #{tpu_custom_call.1} parent=0
    #allocation3 [shape = 'u8[8192]{0}', space=vmem, size = 0x2000, scoped, tag = 'input window, operand 0, single buffered']
    #allocation4 [shape = 's32[1]{0}', space=sflag, size = 0x4, scoped, tag = 'scoped memory for tpu_custom_call.1']
    #allocation5 [shape = 's32[1]{0}', space=sflag, size = 0x4, scoped, tag = 'scoped memory for tpu_custom_call.1']
    #allocation6 [shape = 'u8[65536]{0}', space=vmem, size = 0x10000, scoped, tag = 'input window, operand 1, single buffered']
    #allocation7 [shape = 's32[1]{0}', space=sflag, size = 0x4, scoped, tag = 'scoped memory for tpu_custom_call.1']
    #allocation8 [shape = 'u8[65536]{0}', space=vmem, size = 0x10000, scoped, tag = 'input window, operand 2, single buffered']
    #allocation9 [shape = 'u8[65536]{0}', space=vmem, size = 0x10000, scoped, tag = 'input window, operand 5, single buffered']
    #allocation10 [shape = 's32[1]{0}', space=sflag, size = 0x4, scoped, tag = 'scoped memory for tpu_custom_call.1']
    #allocation11 [shape = 'u8[8192]{0}', space=vmem, size = 0x2000, scoped, tag = 'output window, operand 0, single buffered']
    %12 = vsyncpa [#allocation4], 0
    %13 = vsyncpa [#allocation7], 0
    %14 = vsyncpa [#allocation10], 0
    %15 = vsyncpa [#allocation5], 0
    // Predicated region
    $region2: #{tpu_custom_call.1} parent=1 // pred_check
      _
    $region3: #{tpu_custom_call.1} parent=1 // pred_check_branch
      %17 = sbr.rel (0) target = $region5
    $region4: #{tpu_custom_call.1} parent=1 // pred_region
      %s19 = ssub.s32 256, 256
      %20 = vsyncadd [#allocation4], %s19
      %s21 = sshll.u32 [#allocation3], 4
      %s22 = int_to_ptr.vmem [resolvable:$true] %s21
      %27 = dma.hbm_to_vmem [thread:$0]  %s0, 256, %s22, [#allocation4], 128, 128, 8
    $region5: #{tpu_custom_call.1} parent=1 // pred_fallthru
      _
    // Predicated region
    $region6: #{tpu_custom_call.1} parent=1 // pred_check
      _
    $region7: #{tpu_custom_call.1} parent=1 // pred_check_branch
      %29 = sbr.rel (0) target = $region9
    $region8: #{tpu_custom_call.1} parent=1 // pred_region
      %s31 = ssub.s32 2048, 2048
      %32 = vsyncadd [#allocation7], %s31
      %s33 = sshll.u32 [#allocation6], 4
      %s34 = int_to_ptr.vmem [resolvable:$true] %s33
      %39 = dma.hbm_to_vmem [thread:$0]  %s1, 2048, %s34, [#allocation7], 128, 128, 8
    $region9: #{tpu_custom_call.1} parent=1 // pred_fallthru
      _
    // Predicated region
    $region10: #{tpu_custom_call.1} parent=1 // pred_check
      _
    $region11: #{tpu_custom_call.1} parent=1 // pred_check_branch
      %41 = sbr.rel (0) target = $region13
    $region12: #{tpu_custom_call.1} parent=1 // pred_region
      %s43 = ssub.s32 2048, 2048
      %44 = vsyncadd [#allocation7], %s43
      %s45 = sshll.u32 [#allocation8], 4
      %s46 = int_to_ptr.vmem [resolvable:$true] %s45
      %51 = dma.hbm_to_vmem [thread:$0]  %s2, 2048, %s46, [#allocation7], 128, 128, 8
    $region13: #{tpu_custom_call.1} parent=1 // pred_fallthru
      _
    // Predicated region
    $region14: #{tpu_custom_call.1} parent=1 // pred_check
      _
    $region15: #{tpu_custom_call.1} parent=1 // pred_check_branch
      %53 = sbr.rel (0) target = $region17
    $region16: #{tpu_custom_call.1} parent=1 // pred_region
      _
    $region17: #{tpu_custom_call.1} parent=1 // pred_fallthru
      _
    // Predicated region
    $region18: #{tpu_custom_call.1} parent=1 // pred_check
      _
    $region19: #{tpu_custom_call.1} parent=1 // pred_check_branch
      %55 = sbr.rel (0) target = $region21
    $region20: #{tpu_custom_call.1} parent=1 // pred_region
      _
    $region21: #{tpu_custom_call.1} parent=1 // pred_fallthru
      _
    // Predicated region
    $region22: #{tpu_custom_call.1} parent=1 // pred_check
      _
    $region23: #{tpu_custom_call.1} parent=1 // pred_check_branch
      %57 = sbr.rel (0) target = $region25
    $region24: #{tpu_custom_call.1} parent=1 // pred_region
      %s59 = ssub.s32 2048, 2048
      %60 = vsyncadd [#allocation10], %s59
      %s61 = sshll.u32 [#allocation9], 4
      %s62 = int_to_ptr.vmem [resolvable:$true] %s61
      %67 = dma.hbm_to_vmem [thread:$0]  %s5, 2048, %s62, [#allocation10], 128, 128, 8
    $region25: #{tpu_custom_call.1} parent=1 // pred_fallthru
      _
    // Predicated region
    $region26: #{tpu_custom_call.1} parent=1 // pred_check
      _
    $region27: #{tpu_custom_call.1} parent=1 // pred_check_branch
      %69 = sbr.rel (0) target = $region29
    $region28: #{tpu_custom_call.1} parent=1 // pred_region
      _
    $region29: #{tpu_custom_call.1} parent=1 // pred_fallthru
      _
    // Predicated region
    $region30: #{tpu_custom_call.1} parent=1 // pred_check
      _
    $region31: #{tpu_custom_call.1} parent=1 // pred_check_branch
      %71 = sbr.rel (0) target = $region33
    $region32: #{tpu_custom_call.1} parent=1 // pred_region
      %72 = dma.done [#allocation4], 256
    $region33: #{tpu_custom_call.1} parent=1 // pred_fallthru
      _
    // Predicated region
    $region34: #{tpu_custom_call.1} parent=1 // pred_check
      _
    $region35: #{tpu_custom_call.1} parent=1 // pred_check_branch
      %74 = sbr.rel (0) target = $region37
    $region36: #{tpu_custom_call.1} parent=1 // pred_region
      %75 = dma.done [#allocation7], 2048
    $region37: #{tpu_custom_call.1} parent=1 // pred_fallthru
      _
    // Predicated region
    $region38: #{tpu_custom_call.1} parent=1 // pred_check
      _
    $region39: #{tpu_custom_call.1} parent=1 // pred_check_branch
      %77 = sbr.rel (0) target = $region41
    $region40: #{tpu_custom_call.1} parent=1 // pred_region
      %78 = dma.done [#allocation7], 2048
    $region41: #{tpu_custom_call.1} parent=1 // pred_fallthru
      _
    // Predicated region
    $region42: #{tpu_custom_call.1} parent=1 // pred_check
      _
    $region43: #{tpu_custom_call.1} parent=1 // pred_check_branch
      %80 = sbr.rel (0) target = $region45
    $region44: #{tpu_custom_call.1} parent=1 // pred_region
      %81 = dma.done [#allocation10], 2048
    $region45: #{tpu_custom_call.1} parent=1 // pred_fallthru
      _
    %p82 = scmp.eq.s32.totalorder 0, 0
    // Predicated region
    $region46: #{tpu_custom_call.1} parent=1 // pred_check
      %p83 = pneg %p82
    $region47: #{tpu_custom_call.1} parent=1 // pred_check_branch
      %85 = sbr.rel (%p83) target = $region49
    $region48: #{tpu_custom_call.1} parent=1 // pred_region
      %86 = vst [vmem:[#allocation2] sm:$0xff] 0.0
      %87 = vst [vmem:[#allocation2 + $0x8] sm:$0xff] 0.0
    $region49: #{tpu_custom_call.1} parent=1 // pred_fallthru
      _
    %v88 = vld [vmem:[#allocation3] sm:$0xff]
    %v89 = vld [vmem:[#allocation3 + $0x8] sm:$0xff]
    %v90 = vld [vmem:[#allocation6] sm:$0xff]
    %v91 = vld [vmem:[#allocation6 + $0x8] sm:$0xff]
    %v92 = vld [vmem:[#allocation6 + $0x10] sm:$0xff]
    %v93 = vld [vmem:[#allocation6 + $0x18] sm:$0xff]
    %v94 = vld [vmem:[#allocation6 + $0x20] sm:$0xff]
    %v95 = vld [vmem:[#allocation6 + $0x28] sm:$0xff]
    %v96 = vld [vmem:[#allocation6 + $0x30] sm:$0xff]
    %v97 = vld [vmem:[#allocation6 + $0x38] sm:$0xff]
    %v98 = vld [vmem:[#allocation6 + $0x40] sm:$0xff]
    %v99 = vld [vmem:[#allocation6 + $0x48] sm:$0xff]
    %v100 = vld [vmem:[#allocation6 + $0x50] sm:$0xff]
    %v101 = vld [vmem:[#allocation6 + $0x58] sm:$0xff]
    %v102 = vld [vmem:[#allocation6 + $0x60] sm:$0xff]
    %v103 = vld [vmem:[#allocation6 + $0x68] sm:$0xff]
    %v104 = vld [vmem:[#allocation6 + $0x70] sm:$0xff]
    %v105 = vld [vmem:[#allocation6 + $0x78] sm:$0xff]
    %v106 = vld [vmem:[%s3] sm:$0x1]
    %v108 = vlaneseq
    %v109 = vshrl.u32 %v108, 7
    %v110 = vsub.s32 0, %v109
    %v111 = vrot.slane %v106, %v110
    %113 = vmatprep.subr.mxu0 0.0
    %114 = vmatpush1.msra.mxu0 %v90
    %115 = vmatprep.subr.mxu0 0.0
    %116 = vmatpush1.msra.mxu0 %v91
    %117 = vmatprep.subr.mxu0 0.0
    %118 = vmatpush1.msra.mxu0 %v92
    %119 = vmatprep.subr.mxu0 0.0
    %120 = vmatpush1.msra.mxu0 %v93
    %121 = vmatprep.subr.mxu0 0.0
    %122 = vmatpush1.msra.mxu0 %v94
    %123 = vmatprep.subr.mxu0 0.0
    %124 = vmatpush1.msra.mxu0 %v95
    %125 = vmatprep.subr.mxu0 0.0
    %126 = vmatpush1.msra.mxu0 %v96
    %127 = vmatprep.subr.mxu0 0.0
    %128 = vmatpush1.msra.mxu0 %v97
    %129 = vmatprep.subr.mxu0 0.0
    %130 = vmatpush1.msra.mxu0 %v98
    %131 = vmatprep.subr.mxu0 0.0
    %132 = vmatpush1.msra.mxu0 %v99
    %133 = vmatprep.subr.mxu0 0.0
    %134 = vmatpush1.msra.mxu0 %v100
    %135 = vmatprep.subr.mxu0 0.0
    %136 = vmatpush1.msra.mxu0 %v101
    %137 = vmatprep.subr.mxu0 0.0
    %138 = vmatpush1.msra.mxu0 %v102
    %139 = vmatprep.subr.mxu0 0.0
    %140 = vmatpush1.msra.mxu0 %v103
    %141 = vmatprep.subr.mxu0 0.0
    %142 = vmatpush1.msra.mxu0 %v104
    %143 = vmatprep.subr.mxu0 0.0
    %144 = vmatpush1.msra.mxu0 %v105
    %145 = vmatprep.subr.mxu0 0.0
    %146 = vmatpush1.msra.mxu0 0.0
    %147 = vmatprep.subr.mxu0 0.0
    %148 = vmatpush1.msra.mxu0 0.0
    %149 = vmatprep.subr.mxu0 0.0
    %150 = vmatpush1.msra.mxu0 0.0
    %151 = vmatprep.subr.mxu0 0.0
    %152 = vmatpush1.msra.mxu0 0.0
    %153 = vmatprep.subr.mxu0 0.0
    %154 = vmatpush1.msra.mxu0 0.0
    %155 = vmatprep.subr.mxu0 0.0
    %156 = vmatpush1.msra.mxu0 0.0
    %157 = vmatprep.subr.mxu0 0.0
    %158 = vmatpush1.msra.mxu0 0.0
    %159 = vmatprep.subr.mxu0 0.0
    %160 = vmatpush1.msra.mxu0 0.0
    %161 = vmatprep.subr.mxu0 0.0
    %162 = vmatpush1.msra.mxu0 0.0
    %163 = vmatprep.subr.mxu0 0.0
    %164 = vmatpush1.msra.mxu0 0.0
    %165 = vmatprep.subr.mxu0 0.0
    %166 = vmatpush1.msra.mxu0 0.0
    %167 = vmatprep.subr.mxu0 0.0
    %168 = vmatpush1.msra.mxu0 0.0
    %169 = vmatprep.subr.mxu0 0.0
    %170 = vmatpush1.msra.mxu0 0.0
    %171 = vmatprep.subr.mxu0 0.0
    %172 = vmatpush1.msra.mxu0 0.0
    %173 = vmatprep.subr.mxu0 0.0
    %174 = vmatpush1.msra.mxu0 0.0
    %175 = vmatprep.subr.mxu0 0.0
    %176 = vmatpush1.msra.mxu0 0.0
    %177 = vmatprep.mubr.f32.mxu0 0.0
    %178 = vmatmul.mubr.f32.gmra.mrb[0].mxu0 %v88
    %v179 = vpop.f32.mrb[0].mxu0
    %v180 = vadd.f32 %v111, %v179
    %v181 = vpop.f32.mrb[0].mxu0
    %182 = vmatprep.mubr.f32.mxu0 0.0
    %183 = vmatmul.mubr.f32.gmra.mrb[0].mxu0 %v89
    %v184 = vpop.f32.mrb[0].mxu0
    %v185 = vadd.f32 %v111, %v184
    %v186 = vpop.f32.mrb[0].mxu0
    %187 = vdwg.mxu0
    %v188 = vld [vmem:[#allocation8] sm:$0xff]
    %v189 = vld [vmem:[#allocation8 + $0x8] sm:$0xff]
    %v190 = vld [vmem:[#allocation8 + $0x10] sm:$0xff]
    %v191 = vld [vmem:[#allocation8 + $0x18] sm:$0xff]
    %v192 = vld [vmem:[#allocation8 + $0x20] sm:$0xff]
    %v193 = vld [vmem:[#allocation8 + $0x28] sm:$0xff]
    %v194 = vld [vmem:[#allocation8 + $0x30] sm:$0xff]
    %v195 = vld [vmem:[#allocation8 + $0x38] sm:$0xff]
    %v196 = vld [vmem:[#allocation8 + $0x40] sm:$0xff]
    %v197 = vld [vmem:[#allocation8 + $0x48] sm:$0xff]
    %v198 = vld [vmem:[#allocation8 + $0x50] sm:$0xff]
    %v199 = vld [vmem:[#allocation8 + $0x58] sm:$0xff]
    %v200 = vld [vmem:[#allocation8 + $0x60] sm:$0xff]
    %v201 = vld [vmem:[#allocation8 + $0x68] sm:$0xff]
    %v202 = vld [vmem:[#allocation8 + $0x70] sm:$0xff]
    %v203 = vld [vmem:[#allocation8 + $0x78] sm:$0xff]
    %v204 = vld [vmem:[%s4] sm:$0x1]
    %v206 = vlaneseq
    %v207 = vshrl.u32 %v206, 7
    %v208 = vsub.s32 0, %v207
    %v209 = vrot.slane %v204, %v208
    %211 = vmatprep.subr.mxu0 0.0
    %212 = vmatpush1.msra.mxu0 %v188
    %213 = vmatprep.subr.mxu0 0.0
    %214 = vmatpush1.msra.mxu0 %v189
    %215 = vmatprep.subr.mxu0 0.0
    %216 = vmatpush1.msra.mxu0 %v190
    %217 = vmatprep.subr.mxu0 0.0
    %218 = vmatpush1.msra.mxu0 %v191
    %219 = vmatprep.subr.mxu0 0.0
    %220 = vmatpush1.msra.mxu0 %v192
    %221 = vmatprep.subr.mxu0 0.0
    %222 = vmatpush1.msra.mxu0 %v193
    %223 = vmatprep.subr.mxu0 0.0
    %224 = vmatpush1.msra.mxu0 %v194
    %225 = vmatprep.subr.mxu0 0.0
    %226 = vmatpush1.msra.mxu0 %v195
    %227 = vmatprep.subr.mxu0 0.0
    %228 = vmatpush1.msra.mxu0 %v196
    %229 = vmatprep.subr.mxu0 0.0
    %230 = vmatpush1.msra.mxu0 %v197
    %231 = vmatprep.subr.mxu0 0.0
    %232 = vmatpush1.msra.mxu0 %v198
    %233 = vmatprep.subr.mxu0 0.0
    %234 = vmatpush1.msra.mxu0 %v199
    %235 = vmatprep.subr.mxu0 0.0
    %236 = vmatpush1.msra.mxu0 %v200
    %237 = vmatprep.subr.mxu0 0.0
    %238 = vmatpush1.msra.mxu0 %v201
    %239 = vmatprep.subr.mxu0 0.0
    %240 = vmatpush1.msra.mxu0 %v202
    %241 = vmatprep.subr.mxu0 0.0
    %242 = vmatpush1.msra.mxu0 %v203
    %243 = vmatprep.subr.mxu0 0.0
    %244 = vmatpush1.msra.mxu0 0.0
    %245 = vmatprep.subr.mxu0 0.0
    %246 = vmatpush1.msra.mxu0 0.0
    %247 = vmatprep.subr.mxu0 0.0
    %248 = vmatpush1.msra.mxu0 0.0
    %249 = vmatprep.subr.mxu0 0.0
    %250 = vmatpush1.msra.mxu0 0.0
    %251 = vmatprep.subr.mxu0 0.0
    %252 = vmatpush1.msra.mxu0 0.0
    %253 = vmatprep.subr.mxu0 0.0
    %254 = vmatpush1.msra.mxu0 0.0
    %255 = vmatprep.subr.mxu0 0.0
    %256 = vmatpush1.msra.mxu0 0.0
    %257 = vmatprep.subr.mxu0 0.0
    %258 = vmatpush1.msra.mxu0 0.0
    %259 = vmatprep.subr.mxu0 0.0
    %260 = vmatpush1.msra.mxu0 0.0
    %261 = vmatprep.subr.mxu0 0.0
    %262 = vmatpush1.msra.mxu0 0.0
    %263 = vmatprep.subr.mxu0 0.0
    %264 = vmatpush1.msra.mxu0 0.0
    %265 = vmatprep.subr.mxu0 0.0
    %266 = vmatpush1.msra.mxu0 0.0
    %267 = vmatprep.subr.mxu0 0.0
    %268 = vmatpush1.msra.mxu0 0.0
    %269 = vmatprep.subr.mxu0 0.0
    %270 = vmatpush1.msra.mxu0 0.0
    %271 = vmatprep.subr.mxu0 0.0
    %272 = vmatpush1.msra.mxu0 0.0
    %273 = vmatprep.subr.mxu0 0.0
    %274 = vmatpush1.msra.mxu0 0.0
    %275 = vmatprep.mubr.f32.mxu0 0.0
    %276 = vmatmul.mubr.f32.gmra.mrb[0].mxu0 %v88
    %v277 = vpop.f32.mrb[0].mxu0
    %v278 = vadd.f32 %v209, %v277
    %v279 = vpop.f32.mrb[0].mxu0
    %280 = vmatprep.mubr.f32.mxu0 0.0
    %281 = vmatmul.mubr.f32.gmra.mrb[0].mxu0 %v89
    %v282 = vpop.f32.mrb[0].mxu0
    %v283 = vadd.f32 %v209, %v282
    %v284 = vpop.f32.mrb[0].mxu0
    %285 = vdwg.mxu0
    %v286 = vmul.f32 %v278, 0.5
    %v287 = vmul.f32 %v283, 0.5
    %v288 = vmul.f32 %v278, 0.044715
    %v289 = vmul.f32 %v283, 0.044715
    %v290 = vmul.f32 %v288, %v278
    %v291 = vmul.f32 %v289, %v283
    %v292 = vmul.f32 %v290, %v278
    %v293 = vmul.f32 %v291, %v283
    %v294 = vadd.f32 %v278, %v292
    %v295 = vadd.f32 %v283, %v293
    %v296 = vmul.f32 %v294, 0.7978846
    %v297 = vmul.f32 %v295, 0.7978846
    %v298 = vtanh.pop %v296
    %v299 = vtanh.pop %v297
    %v300 = vadd.f32 %v298, 1.0
    %v301 = vadd.f32 %v299, 1.0
    %v302 = vmul.f32 %v286, %v300
    %v303 = vmul.f32 %v287, %v301
    %v304 = vmul.f32 %v180, %v302
    %v305 = vmul.f32 %v185, %v303
    %v306 = vld [vmem:[#allocation2] sm:$0xff]
    %v307 = vld [vmem:[#allocation2 + $0x8] sm:$0xff]
    %v308 = vld [vmem:[#allocation9] sm:$0xff]
    %v309 = vld [vmem:[#allocation9 + $0x8] sm:$0xff]
    %v310 = vld [vmem:[#allocation9 + $0x10] sm:$0xff]
    %v311 = vld [vmem:[#allocation9 + $0x18] sm:$0xff]
    %v312 = vld [vmem:[#allocation9 + $0x20] sm:$0xff]
    %v313 = vld [vmem:[#allocation9 + $0x28] sm:$0xff]
    %v314 = vld [vmem:[#allocation9 + $0x30] sm:$0xff]
    %v315 = vld [vmem:[#allocation9 + $0x38] sm:$0xff]
    %v316 = vld [vmem:[#allocation9 + $0x40] sm:$0xff]
    %v317 = vld [vmem:[#allocation9 + $0x48] sm:$0xff]
    %v318 = vld [vmem:[#allocation9 + $0x50] sm:$0xff]
    %v319 = vld [vmem:[#allocation9 + $0x58] sm:$0xff]
    %v320 = vld [vmem:[#allocation9 + $0x60] sm:$0xff]
    %v321 = vld [vmem:[#allocation9 + $0x68] sm:$0xff]
    %v322 = vld [vmem:[#allocation9 + $0x70] sm:$0xff]
    %v323 = vld [vmem:[#allocation9 + $0x78] sm:$0xff]
    %324 = vmatprep.subr.mxu0 0.0
    %325 = vmatpush1.msra.mxu0 %v308
    %326 = vmatprep.subr.mxu0 0.0
    %327 = vmatpush1.msra.mxu0 %v309
    %328 = vmatprep.subr.mxu0 0.0
    %329 = vmatpush1.msra.mxu0 %v310
    %330 = vmatprep.subr.mxu0 0.0
    %331 = vmatpush1.msra.mxu0 %v311
    %332 = vmatprep.subr.mxu0 0.0
    %333 = vmatpush1.msra.mxu0 %v312
    %334 = vmatprep.subr.mxu0 0.0
    %335 = vmatpush1.msra.mxu0 %v313
    %336 = vmatprep.subr.mxu0 0.0
    %337 = vmatpush1.msra.mxu0 %v314
    %338 = vmatprep.subr.mxu0 0.0
    %339 = vmatpush1.msra.mxu0 %v315
    %340 = vmatprep.subr.mxu0 0.0
    %341 = vmatpush1.msra.mxu0 %v316
    %342 = vmatprep.subr.mxu0 0.0
    %343 = vmatpush1.msra.mxu0 %v317
    %344 = vmatprep.subr.mxu0 0.0
    %345 = vmatpush1.msra.mxu0 %v318
    %346 = vmatprep.subr.mxu0 0.0
    %347 = vmatpush1.msra.mxu0 %v319
    %348 = vmatprep.subr.mxu0 0.0
    %349 = vmatpush1.msra.mxu0 %v320
    %350 = vmatprep.subr.mxu0 0.0
    %351 = vmatpush1.msra.mxu0 %v321
    %352 = vmatprep.subr.mxu0 0.0
    %353 = vmatpush1.msra.mxu0 %v322
    %354 = vmatprep.subr.mxu0 0.0
    %355 = vmatpush1.msra.mxu0 %v323
    %356 = vmatprep.subr.mxu0 0.0
    %357 = vmatpush1.msra.mxu0 0.0
    %358 = vmatprep.subr.mxu0 0.0
    %359 = vmatpush1.msra.mxu0 0.0
    %360 = vmatprep.subr.mxu0 0.0
    %361 = vmatpush1.msra.mxu0 0.0
    %362 = vmatprep.subr.mxu0 0.0
    %363 = vmatpush1.msra.mxu0 0.0
    %364 = vmatprep.subr.mxu0 0.0
    %365 = vmatpush1.msra.mxu0 0.0
    %366 = vmatprep.subr.mxu0 0.0
    %367 = vmatpush1.msra.mxu0 0.0
    %368 = vmatprep.subr.mxu0 0.0
    %369 = vmatpush1.msra.mxu0 0.0
    %370 = vmatprep.subr.mxu0 0.0
    %371 = vmatpush1.msra.mxu0 0.0
    %372 = vmatprep.subr.mxu0 0.0
    %373 = vmatpush1.msra.mxu0 0.0
    %374 = vmatprep.subr.mxu0 0.0
    %375 = vmatpush1.msra.mxu0 0.0
    %376 = vmatprep.subr.mxu0 0.0
    %377 = vmatpush1.msra.mxu0 0.0
    %378 = vmatprep.subr.mxu0 0.0
    %379 = vmatpush1.msra.mxu0 0.0
    %380 = vmatprep.subr.mxu0 0.0
    %381 = vmatpush1.msra.mxu0 0.0
    %382 = vmatprep.subr.mxu0 0.0
    %383 = vmatpush1.msra.mxu0 0.0
    %384 = vmatprep.subr.mxu0 0.0
    %385 = vmatpush1.msra.mxu0 0.0
    %386 = vmatprep.subr.mxu0 0.0
    %387 = vmatpush1.msra.mxu0 0.0
    %388 = vmatprep.mubr.f32.mxu0 0.0
    %389 = vmatmul.mubr.f32.gmra.mrb[0].mxu0 %v304
    %v390 = vpop.f32.mrb[0].mxu0
    %v391 = vadd.f32 0.0, %v390
    %v392 = vpop.f32.mrb[0].mxu0
    %393 = vmatprep.mubr.f32.mxu0 0.0
    %394 = vmatmul.mubr.f32.gmra.mrb[0].mxu0 %v305
    %v395 = vpop.f32.mrb[0].mxu0
    %v396 = vadd.f32 0.0, %v395
    %v397 = vpop.f32.mrb[0].mxu0
    %398 = vdwg.mxu0
    %v399 = vadd.f32 %v306, %v391
    %v400 = vadd.f32 %v307, %v396
    %401 = vst [vmem:[#allocation2] sm:$0xff] %v399
    %402 = vst [vmem:[#allocation2 + $0x8] sm:$0xff] %v400
    // Predicated region
    $region50: #{tpu_custom_call.1} parent=1 // pred_check
      %p403 = pneg %p82
    $region51: #{tpu_custom_call.1} parent=1 // pred_check_branch
      %405 = sbr.rel (%p403) target = $region53
    $region52: #{tpu_custom_call.1} parent=1 // pred_region
      %v406 = vld [vmem:[#allocation2] sm:$0xff]
      %v407 = vld [vmem:[#allocation2 + $0x8] sm:$0xff]
      %v408 = vld [vmem:[%s6] sm:$0x1]
      %v410 = vlaneseq
      %v411 = vshrl.u32 %v410, 7
      %v412 = vsub.s32 0, %v411
      %v413 = vrot.slane %v408, %v412
      %v415 = vadd.f32 %v406, %v413
      %v416 = vadd.f32 %v407, %v413
      %417 = vst [vmem:[#allocation11] sm:$0xff] %v415
      %418 = vst [vmem:[#allocation11 + $0x8] sm:$0xff] %v416
    $region53: #{tpu_custom_call.1} parent=1 // pred_fallthru
      _
    // Predicated region
    $region54: #{tpu_custom_call.1} parent=1 // pred_check
      _
    $region55: #{tpu_custom_call.1} parent=1 // pred_check_branch
      %420 = sbr.rel (0) target = $region57
    $region56: #{tpu_custom_call.1} parent=1 // pred_region
      %s422 = ssub.s32 256, 256
      %423 = vsyncadd [#allocation5], %s422
      %s424 = sshll.u32 [#allocation11], 4
      %s425 = int_to_ptr.vmem [resolvable:$true] %s424
      %430 = dma.vmem_to_hbm [thread:$0]  %s425, 256, %s7, [#allocation5], 128, 128, 8
    $region57: #{tpu_custom_call.1} parent=1 // pred_fallthru
      _
    // Predicated region
    $region58: #{tpu_custom_call.1} parent=1 // pred_check
      _
    $region59: #{tpu_custom_call.1} parent=1 // pred_check_branch
      %432 = sbr.rel (0) target = $region61
    $region60: #{tpu_custom_call.1} parent=1 // pred_region
      %433 = dma.done [#allocation5], 256
    $region61: #{tpu_custom_call.1} parent=1 // pred_fallthru
      _
    %434 = vsyncpa [#allocation4], 1
    %435 = vsyncpa [#allocation7], 1
    %436 = vsyncpa [#allocation10], 1
    %437 = vsyncpa [#allocation5], 1

</llo_original>
